<compile_context>
chip_gen: v6e
topology: v6e:2x2x1
jax: 0.10.0
libtpu: 0.0.40
codegen_flags: <defaults>
</compile_context>

<pallas_src>
import jax
import jax.numpy as jnp
from jax.experimental import pallas as pl
from jax.experimental.pallas import tpu as pltpu

N_ACTIONS = 8
N_STATES = 2
H1 = 50
H2 = 40
DEFAULT_TB = 2048   # batch tile (lane dimension of every block); multiple of 128


def _mlp_kernel(xt_ref, w12t_ref, b12t_ref, w3t_ref, b3t_ref, outt_ref):
    # xt:   [2, TB]  f32     w12t: [H2, 2] f32     b12t: [H2, 1] f32
    # w3t:  [8, H2]  f32     b3t:  [8, 1]  f32     outt: [8, TB] f32
    xt = xt_ref[...]
    w12t = w12t_ref[...]

    # Fused fc1/fc2 (exact: no activation between them in the reference
    # forward).  K=2 contraction as two VPU broadcast-FMAs, f32 math,
    # transposed orientation so the batch stays on the lane axis.
    h = (w12t[:, 0:1] * xt[0:1, :]
         + w12t[:, 1:2] * xt[1:2, :]
         + b12t_ref[...])                       # [H2, TB]
    h = jnp.maximum(h, 0.0)                     # relu (f32 on the VPU)

    # Final projection (K=40) on the MXU, f32 operands + f32 accumulate.
    # Output is lane-dense [8, TB] -> unmasked vst, minimal HBM writeback.
    outt_ref[...] = (
        jnp.dot(w3t_ref[...], h, preferred_element_type=jnp.float32)
        + b3t_ref[...]
    )


def prepare_params(params):
    """Fold fc1 into fc2 (no activation between them in the reference forward)
    and pre-transpose everything for the batch-on-lanes kernel layout."""
    w1, b1 = params["w1"], params["b1"]
    w2, b2 = params["w2"], params["b2"]
    w3, b3 = params["w3"], params["b3"]

    w12 = w1 @ w2                 # [N_STATES, H2]
    b12 = b1 @ w2 + b2            # [1, H2]
    return {
        "w12t": w12.T.astype(jnp.float32),   # [H2, N_STATES]
        "b12t": b12.T.astype(jnp.float32),   # [H2, 1]
        "w3t": w3.T.astype(jnp.float32),     # [N_ACTIONS, H2]  (kept f32)
        "b3t": b3.T.astype(jnp.float32),     # [N_ACTIONS, 1]
    }


@jax.jit
def net_forward(x, fused):
    """x: [B, N_STATES] float32  ->  [B, N_ACTIONS] float32."""
    B = x.shape[0]

    # Lane-aligned batch; largest tile that fits, but keep >=2 grid steps when
    # there is enough work so a multi-TC chip can shard the batch axis.
    b_align = max(128, ((B + 127) // 128) * 128)
    tb = min(DEFAULT_TB, b_align)
    if b_align >= 2 * 128 and b_align // tb < 2:
        tb = max(128, (((b_align // 2) + 127) // 128) * 128)
    b_pad = ((b_align + tb - 1) // tb) * tb

    # Dense [2, b_pad] layout: one contiguous DMA per tile, no strided reads.
    xt = x.T
    if b_pad != B:
        xt = jnp.pad(xt, ((0, 0), (0, b_pad - B)))

    outt = pl.pallas_call(
        _mlp_kernel,
        out_shape=jax.ShapeDtypeStruct((N_ACTIONS, b_pad), jnp.float32),
        grid=(b_pad // tb,),
        in_specs=[
            pl.BlockSpec((N_STATES, tb), lambda i: (0, i)),      # x^T tile
            pl.BlockSpec((H2, N_STATES), lambda i: (0, 0)),      # W12^T (resident)
            pl.BlockSpec((H2, 1), lambda i: (0, 0)),             # b12^T (resident)
            pl.BlockSpec((N_ACTIONS, H2), lambda i: (0, 0)),     # w3^T  (resident)
            pl.BlockSpec((N_ACTIONS, 1), lambda i: (0, 0)),      # b3^T  (resident)
        ],
        out_specs=pl.BlockSpec((N_ACTIONS, tb), lambda i: (0, i)),
        compiler_params=pltpu.CompilerParams(
            dimension_semantics=("parallel",)
        ),
    )(xt, fused["w12t"], fused["b12t"], fused["w3t"], fused["b3t"])

    return outt[:, :B].T            # [B, N_ACTIONS]


def init_params(key):
    """Deterministic synthetic init mirroring the PyTorch shapes.
    Weights ~ N(0, 0.1) as in the module; biases set to small deterministic
    values (PyTorch's default uniform bias init is not reproduced bit-exactly).
    Weights are stored as [in, out] (PyTorch weight transposed)."""
    k1, k2, k3 = jax.random.split(key, 3)
    return {
        "w1": 0.1 * jax.random.normal(k1, (N_STATES, H1), dtype=jnp.float32),
        "b1": jnp.full((1, H1), 0.01, dtype=jnp.float32),
        "w2": 0.1 * jax.random.normal(k2, (H1, H2), dtype=jnp.float32),
        "b2": jnp.full((1, H2), 0.01, dtype=jnp.float32),
        "w3": 0.1 * jax.random.normal(k3, (H2, N_ACTIONS), dtype=jnp.float32),
        "b3": jnp.full((1, N_ACTIONS), 0.01, dtype=jnp.float32),
    }


def _reference_forward(x, params):
    """Pure-JAX f32 reference of the un-fused PyTorch forward."""
    x1 = x @ params["w1"] + params["b1"]          # fc1 (no activation)
    x2 = x1 @ params["w2"] + params["b2"]         # fc2
    x3 = jnp.maximum(x2, 0.0)                     # relu
    return x3 @ params["w3"] + params["b3"]       # out


if __name__ == "__main__":
    key = jax.random.PRNGKey(0)
    kx, kp = jax.random.split(key)

    B = 8  # small batch of state vectors
    x = jax.random.normal(kx, (B, N_STATES), dtype=jnp.float32)
    params = init_params(kp)
    fused = prepare_params(params)  # fc1/fc2 fusion + transposed layout, done once

    out = net_forward(x, fused)
    out = jax.block_until_ready(out)

    ref = _reference_forward(x, params)
    assert out.shape == (B, N_ACTIONS)
    # All-f32 pipeline; only difference vs the reference is the exact fc1/fc2
    # fold (summation reorder), so tolerance can be tight.
    assert jnp.allclose(out, ref, atol=1e-4, rtol=1e-4), "mismatch vs reference"

    print("KERNEL_OK")
</pallas_src>

<mosaic_0001>
module attributes {stable_mosaic.version = 11 : i64} {
  func.func @_mlp_kernel(%arg0: i32, %arg1: memref<2x128xf32, #tpu.memory_space<vmem>>, %arg2: memref<40x2xf32, #tpu.memory_space<vmem>>, %arg3: memref<40x1xf32, #tpu.memory_space<vmem>>, %arg4: memref<8x40xf32, #tpu.memory_space<vmem>>, %arg5: memref<8x1xf32, #tpu.memory_space<vmem>>, %arg6: memref<8x128xf32, #tpu.memory_space<vmem>>) attributes {dimension_semantics = [#tpu.dimension_semantics<parallel>], iteration_bounds = array<i64: 1>, scalar_prefetch = 0 : i64, scratch_operands = 0 : i64, tpu.core_type = #tpu.core_type<tc>, window_params = [{transform_indices = @transform_0, window_bounds = array<i64: 2, 128>}, {pipeline_mode = #tpu.pipeline_mode<synchronous>, transform_indices = @transform_1, window_bounds = array<i64: 40, 2>}, {pipeline_mode = #tpu.pipeline_mode<synchronous>, transform_indices = @transform_2, window_bounds = array<i64: 40, 1>}, {pipeline_mode = #tpu.pipeline_mode<synchronous>, transform_indices = @transform_3, window_bounds = array<i64: 8, 40>}, {pipeline_mode = #tpu.pipeline_mode<synchronous>, transform_indices = @transform_4, window_bounds = array<i64: 8, 1>}, {transform_indices = @transform_5, window_bounds = array<i64: 8, 128>}]} {
    %c0 = arith.constant 0 : index
    %c0_0 = arith.constant 0 : index
    %0 = vector.load %arg1[%c0, %c0_0] : memref<2x128xf32, #tpu.memory_space<vmem>>, vector<2x128xf32>
    %c0_1 = arith.constant 0 : index
    %c0_2 = arith.constant 0 : index
    %1 = vector.load %arg2[%c0_1, %c0_2] : memref<40x2xf32, #tpu.memory_space<vmem>>, vector<40x2xf32>
    %2 = vector.extract_strided_slice %1 {offsets = [0, 0], sizes = [40, 1], strides = [1, 1]} : vector<40x2xf32> to vector<40x1xf32>
    %3 = vector.extract_strided_slice %0 {offsets = [0, 0], sizes = [1, 128], strides = [1, 1]} : vector<2x128xf32> to vector<1x128xf32>
    %4 = vector.broadcast %2 : vector<40x1xf32> to vector<40x128xf32>
    %5 = vector.broadcast %3 : vector<1x128xf32> to vector<40x128xf32>
    %6 = arith.mulf %4, %5 : vector<40x128xf32>
    %7 = vector.extract_strided_slice %1 {offsets = [0, 1], sizes = [40, 1], strides = [1, 1]} : vector<40x2xf32> to vector<40x1xf32>
    %8 = vector.extract_strided_slice %0 {offsets = [1, 0], sizes = [1, 128], strides = [1, 1]} : vector<2x128xf32> to vector<1x128xf32>
    %9 = vector.broadcast %7 : vector<40x1xf32> to vector<40x128xf32>
    %10 = vector.broadcast %8 : vector<1x128xf32> to vector<40x128xf32>
    %11 = arith.mulf %9, %10 : vector<40x128xf32>
    %12 = arith.addf %6, %11 : vector<40x128xf32>
    %c0_3 = arith.constant 0 : index
    %c0_4 = arith.constant 0 : index
    %13 = vector.load %arg3[%c0_3, %c0_4] : memref<40x1xf32, #tpu.memory_space<vmem>>, vector<40x1xf32>
    %14 = vector.broadcast %13 : vector<40x1xf32> to vector<40x128xf32>
    %15 = arith.addf %12, %14 : vector<40x128xf32>
    %cst = arith.constant 0.000000e+00 : f32
    %16 = vector.broadcast %cst : f32 to vector<40x128xf32>
    %17 = arith.maximumf %15, %16 : vector<40x128xf32>
    %c0_5 = arith.constant 0 : index
    %c0_6 = arith.constant 0 : index
    %18 = vector.load %arg4[%c0_5, %c0_6] : memref<8x40xf32, #tpu.memory_space<vmem>>, vector<8x40xf32>
    %cst_7 = arith.constant dense<0.000000e+00> : vector<8x128xf32>
    %19 = tpu.matmul %18, %17, %cst_7 {dimension_numbers = #tpu.dot_dimension_numbers<[1], [0], [0], [1], [0, 0, 1, 1], [], []>} : vector<8x40xf32>, vector<40x128xf32>, vector<8x128xf32> -> vector<8x128xf32>
    %c0_8 = arith.constant 0 : index
    %c0_9 = arith.constant 0 : index
    %20 = vector.load %arg5[%c0_8, %c0_9] : memref<8x1xf32, #tpu.memory_space<vmem>>, vector<8x1xf32>
    %21 = vector.broadcast %20 : vector<8x1xf32> to vector<8x128xf32>
    %22 = arith.addf %19, %21 : vector<8x128xf32>
    %c0_10 = arith.constant 0 : index
    %c0_11 = arith.constant 0 : index
    %23 = vector.load %arg6[%c0_10, %c0_11] : memref<8x128xf32, #tpu.memory_space<vmem>>, vector<8x128xf32>
    tpu.vector_store %arg6[%c0_10, %c0_11], %22 {strides = array<i32>} : memref<8x128xf32, #tpu.memory_space<vmem>>, vector<8x128xf32>,
    return
  }
  func.func @transform_0(%arg0: i32) -> (i32, i32) {
    %c0_i32 = arith.constant 0 : i32
    %c0_i32_0 = arith.constant 0 : i32
    return %c0_i32, %arg0 : i32, i32
  }
  func.func @transform_1(%arg0: i32) -> (i32, i32) {
    %c0_i32 = arith.constant 0 : i32
    %c0_i32_0 = arith.constant 0 : i32
    %c0_i32_1 = arith.constant 0 : i32
    return %c0_i32, %c0_i32_0 : i32, i32
  }
  func.func @transform_2(%arg0: i32) -> (i32, i32) {
    %c0_i32 = arith.constant 0 : i32
    %c0_i32_0 = arith.constant 0 : i32
    %c0_i32_1 = arith.constant 0 : i32
    return %c0_i32, %c0_i32_0 : i32, i32
  }
  func.func @transform_3(%arg0: i32) -> (i32, i32) {
    %c0_i32 = arith.constant 0 : i32
    %c0_i32_0 = arith.constant 0 : i32
    %c0_i32_1 = arith.constant 0 : i32
    return %c0_i32, %c0_i32_0 : i32, i32
  }
  func.func @transform_4(%arg0: i32) -> (i32, i32) {
    %c0_i32 = arith.constant 0 : i32
    %c0_i32_0 = arith.constant 0 : i32
    %c0_i32_1 = arith.constant 0 : i32
    return %c0_i32, %c0_i32_0 : i32, i32
  }
  func.func @transform_5(%arg0: i32) -> (i32, i32) {
    %c0_i32 = arith.constant 0 : i32
    %c0_i32_0 = arith.constant 0 : i32
    return %c0_i32, %arg0 : i32, i32
  }
}

</mosaic_0001>

<llo_original>
// kernel: net_forward.1
$region0: #{net_forward.1}
  #allocation0 [shape = 'u32[]', space=smem, size = 0x4, offset = 0x4, fixed_abs, tag = 'smem constant byte address 0x4 - core index']
  #allocation1 [shape = 'u32[144,128]{1,0:T(1,128)}', space=vmem, size = 0x12000, scoped, tag = 'internal scratch']
  %s0 = inlined_call_operand.vmem [shape: f32[2,128], index: 0, kind: input, shape index: {}]
  %s1 = inlined_call_operand.vmem [shape: f32[40,2], index: 1, kind: input, shape index: {}]
  %s2 = inlined_call_operand.vmem [shape: f32[40,1], index: 2, kind: input, shape index: {}]
  %s3 = inlined_call_operand.vmem [shape: f32[8,40], index: 3, kind: input, shape index: {}]
  %s4 = inlined_call_operand.vmem [shape: f32[8,1], index: 4, kind: input, shape index: {}]
  %s5 = inlined_call_operand.vmem [shape: f32[8,128], index: 5, kind: output, shape index: {}]
  %s6 = sld [smem:[#allocation0]]
  $region30: #{net_forward.1} parent=0
    _
  %s8 = ssub.s32 1, %s6
  %s9 = scalar_select 0, %s8, %s6
  // Predicated region
  $region2: #{net_forward.1} parent=0 // pred_check
    _
  $region3: #{net_forward.1} parent=0 // pred_check_branch
    %11 = sbr.rel (0) target = $region5
  $region4: #{net_forward.1} parent=0 // pred_region
    _
  $region5: #{net_forward.1} parent=0 // pred_fallthru
    _
  // Predicated region
  $region6: #{net_forward.1} parent=0 // pred_check
    _
  $region7: #{net_forward.1} parent=0 // pred_check_branch
    %13 = sbr.rel (0) target = $region9
  $region8: #{net_forward.1} parent=0 // pred_region
    _
  $region9: #{net_forward.1} parent=0 // pred_fallthru
    _
  // Predicated region
  $region10: #{net_forward.1} parent=0 // pred_check
    _
  $region11: #{net_forward.1} parent=0 // pred_check_branch
    %15 = sbr.rel (0) target = $region13
  $region12: #{net_forward.1} parent=0 // pred_region
    _
  $region13: #{net_forward.1} parent=0 // pred_fallthru
    _
  // Predicated region
  $region14: #{net_forward.1} parent=0 // pred_check
    _
  $region15: #{net_forward.1} parent=0 // pred_check_branch
    %17 = sbr.rel (0) target = $region17
  $region16: #{net_forward.1} parent=0 // pred_region
    _
  $region17: #{net_forward.1} parent=0 // pred_fallthru
    _
  // Predicated region
  $region18: #{net_forward.1} parent=0 // pred_check
    _
  $region19: #{net_forward.1} parent=0 // pred_check_branch
    %19 = sbr.rel (0) target = $region21
  $region20: #{net_forward.1} parent=0 // pred_region
    _
  $region21: #{net_forward.1} parent=0 // pred_fallthru
    _
  %v20 = vld [vmem:[%s0] sm:$0x3]
  %v21 = vld [vmem:[%s1] sm:$0xff]
  %v22 = vld [vmem:[%s1 + $0x8] sm:$0xff]
  %v23 = vld [vmem:[%s1 + $0x10] sm:$0xff]
  %v24 = vld [vmem:[%s1 + $0x18] sm:$0xff]
  %v25 = vld [vmem:[%s1 + $0x20] sm:$0xff]
  %27 = vset.pattern.permute.xlu0 0
  %28 = vperm.xlu0 %27, %v21
  %v29 = vpop.permute.xlu0 %28
  %32 = vset.pattern.permute.xlu0 0
  %33 = vperm.xlu0 %32, %v22
  %v34 = vpop.permute.xlu0 %33
  %37 = vset.pattern.permute.xlu0 0
  %38 = vperm.xlu0 %37, %v23
  %v39 = vpop.permute.xlu0 %38
  %42 = vset.pattern.permute.xlu0 0
  %43 = vperm.xlu0 %42, %v24
  %v44 = vpop.permute.xlu0 %43
  %47 = vset.pattern.permute.xlu0 0
  %48 = vperm.xlu0 %47, %v25
  %v49 = vpop.permute.xlu0 %48
  %v51 = vlaneseq
  %v52 = vshrl.u32 %v51, 7
  %v53 = vsub.s32 0, %v52
  %v54 = vrot.slane %v20, %v53
  %v55 = vmul.f32 %v29, %v54
  %v56 = vmul.f32 %v34, %v54
  %v57 = vmul.f32 %v39, %v54
  %v58 = vmul.f32 %v44, %v54
  %v59 = vmul.f32 %v49, %v54
  %60 = vset.pattern.permute.xlu0 1
  %61 = vperm.xlu0 %60, %v21
  %v62 = vpop.permute.xlu0 %61
  %64 = vset.pattern.permute.xlu0 1
  %65 = vperm.xlu0 %64, %v22
  %v66 = vpop.permute.xlu0 %65
  %68 = vset.pattern.permute.xlu0 1
  %69 = vperm.xlu0 %68, %v23
  %v70 = vpop.permute.xlu0 %69
  %72 = vset.pattern.permute.xlu0 1
  %73 = vperm.xlu0 %72, %v24
  %v74 = vpop.permute.xlu0 %73
  %76 = vset.pattern.permute.xlu0 1
  %77 = vperm.xlu0 %76, %v25
  %v78 = vpop.permute.xlu0 %77
  %v80 = vlaneseq
  %v81 = vshrl.u32 %v80, 7
  %v82 = vsub.s32 1, %v81
  %v83 = vrot.slane %v20, %v82
  %v84 = vmul.f32 %v62, %v83
  %v85 = vmul.f32 %v66, %v83
  %v86 = vmul.f32 %v70, %v83
  %v87 = vmul.f32 %v74, %v83
  %v88 = vmul.f32 %v78, %v83
  %v89 = vadd.f32 %v55, %v84
  %v90 = vadd.f32 %v56, %v85
  %v91 = vadd.f32 %v57, %v86
  %v92 = vadd.f32 %v58, %v87
  %v93 = vadd.f32 %v59, %v88
  %v94 = vld [vmem:[%s2] sm:$0xff]
  %v95 = vld [vmem:[%s2 + $0x8] sm:$0xff]
  %v96 = vld [vmem:[%s2 + $0x10] sm:$0xff]
  %v97 = vld [vmem:[%s2 + $0x18] sm:$0xff]
  %v98 = vld [vmem:[%s2 + $0x20] sm:$0xff]
  %100 = vset.pattern.permute.xlu0 0
  %101 = vperm.xlu0 %100, %v94
  %v102 = vpop.permute.xlu0 %101
  %105 = vset.pattern.permute.xlu0 0
  %106 = vperm.xlu0 %105, %v95
  %v107 = vpop.permute.xlu0 %106
  %110 = vset.pattern.permute.xlu0 0
  %111 = vperm.xlu0 %110, %v96
  %v112 = vpop.permute.xlu0 %111
  %115 = vset.pattern.permute.xlu0 0
  %116 = vperm.xlu0 %115, %v97
  %v117 = vpop.permute.xlu0 %116
  %120 = vset.pattern.permute.xlu0 0
  %121 = vperm.xlu0 %120, %v98
  %v122 = vpop.permute.xlu0 %121
  %v124 = vadd.f32 %v89, %v102
  %v125 = vadd.f32 %v90, %v107
  %v126 = vadd.f32 %v91, %v112
  %v127 = vadd.f32 %v92, %v117
  %v128 = vadd.f32 %v93, %v122
  %v129 = vmax.f32 %v124, 0.0
  %v130 = vmax.f32 %v125, 0.0
  %v131 = vmax.f32 %v126, 0.0
  %v132 = vmax.f32 %v127, 0.0
  %v133 = vmax.f32 %v128, 0.0
  %v134 = vld [vmem:[%s3] sm:$0xff]
  %v135 = vld [vmem:[%s4] sm:$0xff]
  %137 = vset.pattern.permute.xlu0 0
  %138 = vperm.xlu0 %137, %v135
  %v139 = vpop.permute.xlu0 %138
  %vm141 = vcmask 326656
  %v143 = vsel %vm141, %v134, 0
  %145 = vmatprep.subr.mxu0 0.0
  %146 = vmatpush1.msra.mxu0 0.0
  %147 = vmatprep.subr.mxu0 0.0
  %148 = vmatpush1.msra.mxu0 0.0
  %149 = vmatprep.subr.mxu0 0.0
  %150 = vmatpush1.msra.mxu0 0.0
  %151 = vmatprep.subr.mxu0 0.0
  %152 = vmatpush1.msra.mxu0 0.0
  %153 = vmatprep.subr.mxu0 0.0
  %154 = vmatpush1.msra.mxu0 0.0
  %155 = vmatprep.subr.mxu0 0.0
  %156 = vmatpush1.msra.mxu0 0.0
  %157 = vmatprep.subr.mxu0 0.0
  %158 = vmatpush1.msra.mxu0 0.0
  %159 = vmatprep.subr.mxu0 0.0
  %160 = vmatpush1.msra.mxu0 0.0
  %161 = vmatprep.subr.mxu0 0.0
  %162 = vmatpush1.msra.mxu0 0.0
  %163 = vmatprep.subr.mxu0 0.0
  %164 = vmatpush1.msra.mxu0 0.0
  %165 = vmatprep.subr.mxu0 0.0
  %166 = vmatpush1.msra.mxu0 0.0
  %167 = vmatprep.subr.mxu0 0.0
  %168 = vmatpush1.msra.mxu0 %v133
  %169 = vmatprep.subr.mxu0 0.0
  %170 = vmatpush1.msra.mxu0 %v132
  %171 = vmatprep.subr.mxu0 0.0
  %172 = vmatpush1.msra.mxu0 %v131
  %173 = vmatprep.subr.mxu0 0.0
  %174 = vmatpush1.msra.mxu0 %v130
  %175 = vmatprep.subr.mxu0 0.0
  %176 = vmatpush1.msra.mxu0 %v129
  %177 = vmatprep.subr.mxu0 0.0
  %178 = vmatpush2.msra.mxu0 0.0
  %179 = vmatprep.subr.mxu0 0.0
  %180 = vmatpush2.msra.mxu0 0.0
  %181 = vmatprep.subr.mxu0 0.0
  %182 = vmatpush2.msra.mxu0 0.0
  %183 = vmatprep.subr.mxu0 0.0
  %184 = vmatpush2.msra.mxu0 0.0
  %185 = vmatprep.subr.mxu0 0.0
  %186 = vmatpush2.msra.mxu0 0.0
  %187 = vmatprep.subr.mxu0 0.0
  %188 = vmatpush2.msra.mxu0 0.0
  %189 = vmatprep.subr.mxu0 0.0
  %190 = vmatpush2.msra.mxu0 0.0
  %191 = vmatprep.subr.mxu0 0.0
  %192 = vmatpush2.msra.mxu0 0.0
  %193 = vmatprep.subr.mxu0 0.0
  %194 = vmatpush2.msra.mxu0 0.0
  %195 = vmatprep.subr.mxu0 0.0
  %196 = vmatpush2.msra.mxu0 0.0
  %197 = vmatprep.subr.mxu0 0.0
  %198 = vmatpush2.msra.mxu0 0.0
  %199 = vmatprep.subr.mxu0 0.0
  %200 = vmatpush2.msra.mxu0 0.0
  %201 = vmatprep.subr.mxu0 0.0
  %202 = vmatpush2.msra.mxu0 0.0
  %203 = vmatprep.subr.mxu0 0.0
  %204 = vmatpush2.msra.mxu0 0.0
  %205 = vmatprep.subr.mxu0 0.0
  %206 = vmatpush2.msra.mxu0 0.0
  %207 = vmatprep.subr.mxu0 0.0
  %208 = vmatpush2.msra.mxu0 0.0
  %209 = vmatprep.mubr.f32.mxu0 0.0
  %210 = vmatmul.mubr.f32.gmra.mxu0 %v143
  %v211 = vpop.f32.mrf.mxu0
  %v212 = vadd.f32 %v139, %v211
  %v213 = vpop.f32.mrf.mxu0
  %214 = vdwg.mxu0
  %215 = vst [vmem:[%s5] sm:$0xff] %v212
  // Predicated region
  $region22: #{net_forward.1} parent=0 // pred_check
    _
  $region23: #{net_forward.1} parent=0 // pred_check_branch
    %217 = sbr.rel (0) target = $region25
  $region24: #{net_forward.1} parent=0 // pred_region
    _
  $region25: #{net_forward.1} parent=0 // pred_fallthru
    _
  // Predicated region
  $region26: #{net_forward.1} parent=0 // pred_check
    _
  $region27: #{net_forward.1} parent=0 // pred_check_branch
    %219 = sbr.rel (0) target = $region29
  $region28: #{net_forward.1} parent=0 // pred_region
    _
  $region29: #{net_forward.1} parent=0 // pred_fallthru
    _

</llo_original>
